<compile_context>
chip_gen: v5e
topology: v5e:2x2
jax: 0.10.0
libtpu: 0.0.40
codegen_flags: <defaults>
</compile_context>

<pallas_src>
import functools

import jax
import jax.numpy as jnp
from jax.experimental import pallas as pl
from jax.experimental.pallas import tpu as pltpu


def _critic_kernel(s_ref, a_ref, w1_ref, b1_ref, w2_ref, b2_ref, w3_ref, b3_ref,
                   out_ref):
    # Fused concat (VPU/XLU filler, MXU is the bottleneck): build
    # [states | actions] in-register, never touching HBM with it.
    x = jnp.concatenate([s_ref[...], a_ref[...]], axis=-1)          # (tb, S+A)

    # Layer 1: one MXU pass over the fused input.
    h1 = jnp.dot(x, w1_ref[...], preferred_element_type=jnp.float32) + b1_ref[...]
    h1 = jnp.maximum(h1, 0.0)                                       # ReLU on VPU

    # Layer 2.
    h2 = jnp.dot(h1, w2_ref[...], preferred_element_type=jnp.float32) + b2_ref[...]
    h2 = jnp.maximum(h2, 0.0)                                       # ReLU on VPU

    # Final layer has out_features == 1: VPU mul + XLU lane reduce instead of a
    # wasteful 1-wide MXU matmul.  w3_ref is (1, H) -> broadcasts.
    out_ref[...] = (jnp.sum(h2 * w3_ref[...], axis=-1, keepdims=True)
                    + b3_ref[...])


def _round_up(x, m):
    return ((x + m - 1) // m) * m


@functools.partial(jax.jit, static_argnames=("tile_b",))
def critic_forward(states, actions, params, *, tile_b=2048):
    """Pallas implementation of Critic.forward.

    states:  (B, state_dim)  float32
    actions: (B, action_dim) float32
    returns: (B, 1)          float32
    """
    w1, b1, w2, b2, w3_row, b3 = params
    B, state_dim = states.shape
    action_dim = actions.shape[1]
    in_dim = state_dim + action_dim
    hidden_dim = w2.shape[0]

    # ---- batch-tile selection ------------------------------------------------
    if tile_b < B:
        # Always a multiple of 8 regardless of the user-supplied tile_b.
        tb = max(8, (min(tile_b, B) // 8) * 8)
    else:
        # One tile covers the whole batch: full-extent block is always legal.
        tb = B
        if B >= 16:
            # Give the "parallel" grid axis >= 2 steps so both v7x TensorCores
            # get work; costs one ~0.35 us extra step on 1-TC chips (negligible).
            tb = _round_up(pl.cdiv(B, 2), 8)
    grid = (pl.cdiv(B, tb),)
    # No jnp.pad / out[:B] slice: Pallas masks the ragged last tile's OOB reads
    # and writes; the math is row-independent so garbage rows never reach HBM.

    batch_spec = lambda cols: pl.BlockSpec((tb, cols), lambda i: (i, 0))
    resident = lambda shape: pl.BlockSpec(shape, lambda i: (0, 0))  # VMEM-resident

    # Advisory cost hint so XLA schedules/overlaps the custom call well when the
    # critic sits inside a bigger step.
    flops = 2 * B * (in_dim * hidden_dim + hidden_dim * hidden_dim + hidden_dim)
    param_bytes = 4 * (in_dim * hidden_dim + hidden_dim * hidden_dim
                       + 3 * hidden_dim + 1)
    bytes_accessed = 4 * B * (in_dim + 1) + param_bytes

    out = pl.pallas_call(
        _critic_kernel,
        out_shape=jax.ShapeDtypeStruct((B, 1), jnp.float32),
        grid=grid,
        in_specs=[
            batch_spec(state_dim),                 # states tile
            batch_spec(action_dim),                # actions tile
            resident((in_dim, hidden_dim)),        # fused W1
            resident((1, hidden_dim)),             # b1
            resident((hidden_dim, hidden_dim)),    # w2
            resident((1, hidden_dim)),             # b2
            resident((1, hidden_dim)),             # w3 as a row
            resident((1, 1)),                      # b3
        ],
        out_specs=pl.BlockSpec((tb, 1), lambda i: (i, 0)),
        compiler_params=pltpu.CompilerParams(
            dimension_semantics=("parallel",)),    # both TCs on v7x
        cost_estimate=pl.CostEstimate(flops=flops, transcendentals=0,
                                      bytes_accessed=bytes_accessed),
    )(states, actions, w1, b1, w2, b2, w3_row, b3)

    return out


def init_critic_params(key, state_dim, action_dim, hidden_dim):
    """Deterministic synthetic init (stand-in for utils.weight_init)."""
    # TODO(synk): utils.weight_init (orthogonal init) not reproduced; synthetic init only.
    in_dim = state_dim + action_dim
    k1, k2, k3 = jax.random.split(key, 3)
    w1 = jax.random.normal(k1, (in_dim, hidden_dim), jnp.float32) * 0.1
    b1 = jnp.zeros((1, hidden_dim), jnp.float32)
    w2 = jax.random.normal(k2, (hidden_dim, hidden_dim), jnp.float32) * 0.1
    b2 = jnp.zeros((1, hidden_dim), jnp.float32)
    w3_row = jax.random.normal(k3, (1, hidden_dim), jnp.float32) * 0.1
    b3 = jnp.zeros((1, 1), jnp.float32)
    return (w1, b1, w2, b2, w3_row, b3)


def critic_reference(states, actions, params):
    """Plain-JAX reference matching the torch module semantics."""
    w1, b1, w2, b2, w3_row, b3 = params
    x = jnp.concatenate([states, actions], axis=1)
    h1 = jnp.maximum(x @ w1 + b1, 0.0)
    h2 = jnp.maximum(h1 @ w2 + b2, 0.0)
    return h2 @ w3_row.T + b3


if __name__ == "__main__":
    state_dim, action_dim, hidden_dim = 12, 4, 32

    key = jax.random.PRNGKey(0)
    k_s, k_a, k_p = jax.random.split(key, 3)
    params = init_critic_params(k_p, state_dim, action_dim, hidden_dim)

    # Small-batch check (single full-extent tile, grid of 1).
    batch = 8
    states = jax.random.normal(k_s, (batch, state_dim), jnp.float32)
    actions = jax.random.normal(k_a, (batch, action_dim), jnp.float32)
    out = critic_forward(states, actions, params)
    jax.block_until_ready(out)
    ref = critic_reference(states, actions, params)
    assert out.shape == (batch, 1)
    assert jnp.allclose(out, ref, atol=1e-5, rtol=1e-5)

    # Mid-size batch, default tile: exercises the 2-step "parallel" split and
    # masked ragged last tile (tb=152, grid=2, rows 300..303 masked).
    batch2 = 300
    states2 = jax.random.normal(k_s, (batch2, state_dim), jnp.float32)
    actions2 = jax.random.normal(k_a, (batch2, action_dim), jnp.float32)
    out2 = critic_forward(states2, actions2, params)
    jax.block_until_ready(out2)
    ref2 = critic_reference(states2, actions2, params)
    assert out2.shape == (batch2, 1)
    assert jnp.allclose(out2, ref2, atol=1e-5, rtol=1e-5)

    # Non-multiple-of-8 user tile: exercises the forced round-to-8 path
    # (tile_b=100 -> tb=96, grid=4, ragged masked last tile).
    out3 = critic_forward(states2, actions2, params, tile_b=100)
    jax.block_until_ready(out3)
    assert out3.shape == (batch2, 1)
    assert jnp.allclose(out3, ref2, atol=1e-5, rtol=1e-5)

    print("KERNEL_OK")
</pallas_src>

<mosaic_0001>
module attributes {stable_mosaic.version = 11 : i64} {
  func.func @_critic_kernel(%arg0: i32, %arg1: memref<8x12xf32, #tpu.memory_space<vmem>>, %arg2: memref<8x4xf32, #tpu.memory_space<vmem>>, %arg3: memref<16x32xf32, #tpu.memory_space<vmem>>, %arg4: memref<1x32xf32, #tpu.memory_space<vmem>>, %arg5: memref<32x32xf32, #tpu.memory_space<vmem>>, %arg6: memref<1x32xf32, #tpu.memory_space<vmem>>, %arg7: memref<1x32xf32, #tpu.memory_space<vmem>>, %arg8: memref<1x1xf32, #tpu.memory_space<vmem>>, %arg9: memref<8x1xf32, #tpu.memory_space<vmem>>) attributes {dimension_semantics = [#tpu.dimension_semantics<parallel>], iteration_bounds = array<i64: 1>, scalar_prefetch = 0 : i64, scratch_operands = 0 : i64, tpu.core_type = #tpu.core_type<tc>, window_params = [{transform_indices = @transform_0, window_bounds = array<i64: 8, 12>}, {transform_indices = @transform_1, window_bounds = array<i64: 8, 4>}, {pipeline_mode = #tpu.pipeline_mode<synchronous>, transform_indices = @transform_2, window_bounds = array<i64: 16, 32>}, {pipeline_mode = #tpu.pipeline_mode<synchronous>, transform_indices = @transform_3, window_bounds = array<i64: 1, 32>}, {pipeline_mode = #tpu.pipeline_mode<synchronous>, transform_indices = @transform_4, window_bounds = array<i64: 32, 32>}, {pipeline_mode = #tpu.pipeline_mode<synchronous>, transform_indices = @transform_5, window_bounds = array<i64: 1, 32>}, {pipeline_mode = #tpu.pipeline_mode<synchronous>, transform_indices = @transform_6, window_bounds = array<i64: 1, 32>}, {pipeline_mode = #tpu.pipeline_mode<synchronous>, transform_indices = @transform_7, window_bounds = array<i64: 1, 1>}, {transform_indices = @transform_8, window_bounds = array<i64: 8, 1>}]} {
    %c0 = arith.constant 0 : index
    %c0_0 = arith.constant 0 : index
    %0 = vector.load %arg1[%c0, %c0_0] : memref<8x12xf32, #tpu.memory_space<vmem>>, vector<8x12xf32>
    %c0_1 = arith.constant 0 : index
    %c0_2 = arith.constant 0 : index
    %1 = vector.load %arg2[%c0_1, %c0_2] : memref<8x4xf32, #tpu.memory_space<vmem>>, vector<8x4xf32>
    %2 = tpu.concatenate %0, %1 in 1 : vector<8x12xf32>, vector<8x4xf32> -> vector<8x16xf32>
    %c0_3 = arith.constant 0 : index
    %c0_4 = arith.constant 0 : index
    %3 = vector.load %arg3[%c0_3, %c0_4] : memref<16x32xf32, #tpu.memory_space<vmem>>, vector<16x32xf32>
    %cst = arith.constant dense<0.000000e+00> : vector<8x32xf32>
    %4 = tpu.matmul %2, %3, %cst {dimension_numbers = #tpu.dot_dimension_numbers<[1], [0], [0], [1], [0, 0, 1, 1], [], []>} : vector<8x16xf32>, vector<16x32xf32>, vector<8x32xf32> -> vector<8x32xf32>
    %c0_5 = arith.constant 0 : index
    %c0_6 = arith.constant 0 : index
    %5 = vector.load %arg4[%c0_5, %c0_6] : memref<1x32xf32, #tpu.memory_space<vmem>>, vector<1x32xf32>
    %6 = vector.broadcast %5 : vector<1x32xf32> to vector<8x32xf32>
    %7 = arith.addf %4, %6 : vector<8x32xf32>
    %cst_7 = arith.constant 0.000000e+00 : f32
    %8 = vector.broadcast %cst_7 : f32 to vector<8x32xf32>
    %9 = arith.maximumf %7, %8 : vector<8x32xf32>
    %c0_8 = arith.constant 0 : index
    %c0_9 = arith.constant 0 : index
    %10 = vector.load %arg5[%c0_8, %c0_9] : memref<32x32xf32, #tpu.memory_space<vmem>>, vector<32x32xf32>
    %cst_10 = arith.constant dense<0.000000e+00> : vector<8x32xf32>
    %11 = tpu.matmul %9, %10, %cst_10 {dimension_numbers = #tpu.dot_dimension_numbers<[1], [0], [0], [1], [0, 0, 1, 1], [], []>} : vector<8x32xf32>, vector<32x32xf32>, vector<8x32xf32> -> vector<8x32xf32>
    %c0_11 = arith.constant 0 : index
    %c0_12 = arith.constant 0 : index
    %12 = vector.load %arg6[%c0_11, %c0_12] : memref<1x32xf32, #tpu.memory_space<vmem>>, vector<1x32xf32>
    %13 = vector.broadcast %12 : vector<1x32xf32> to vector<8x32xf32>
    %14 = arith.addf %11, %13 : vector<8x32xf32>
    %cst_13 = arith.constant 0.000000e+00 : f32
    %15 = vector.broadcast %cst_13 : f32 to vector<8x32xf32>
    %16 = arith.maximumf %14, %15 : vector<8x32xf32>
    %c0_14 = arith.constant 0 : index
    %c0_15 = arith.constant 0 : index
    %17 = vector.load %arg7[%c0_14, %c0_15] : memref<1x32xf32, #tpu.memory_space<vmem>>, vector<1x32xf32>
    %18 = vector.broadcast %17 : vector<1x32xf32> to vector<8x32xf32>
    %19 = arith.mulf %16, %18 : vector<8x32xf32>
    %cst_16 = arith.constant dense<0.000000e+00> : vector<8xf32>
    %20 = vector.multi_reduction <add>, %19, %cst_16 [1] : vector<8x32xf32> to vector<8xf32>
    %21 = vector.shape_cast %20 : vector<8xf32> to vector<8x1xf32>
    %c0_17 = arith.constant 0 : index
    %c0_18 = arith.constant 0 : index
    %22 = vector.load %arg8[%c0_17, %c0_18] : memref<1x1xf32, #tpu.memory_space<vmem>>, vector<1x1xf32>
    %23 = vector.broadcast %22 : vector<1x1xf32> to vector<8x1xf32>
    %24 = arith.addf %21, %23 : vector<8x1xf32>
    %c0_19 = arith.constant 0 : index
    %c0_20 = arith.constant 0 : index
    %25 = vector.load %arg9[%c0_19, %c0_20] : memref<8x1xf32, #tpu.memory_space<vmem>>, vector<8x1xf32>
    tpu.vector_store %arg9[%c0_19, %c0_20], %24 {strides = array<i32>} : memref<8x1xf32, #tpu.memory_space<vmem>>, vector<8x1xf32>,
    return
  }
  func.func @transform_0(%arg0: i32) -> (i32, i32) {
    %c0_i32 = arith.constant 0 : i32
    %c0_i32_0 = arith.constant 0 : i32
    return %arg0, %c0_i32 : i32, i32
  }
  func.func @transform_1(%arg0: i32) -> (i32, i32) {
    %c0_i32 = arith.constant 0 : i32
    %c0_i32_0 = arith.constant 0 : i32
    return %arg0, %c0_i32 : i32, i32
  }
  func.func @transform_2(%arg0: i32) -> (i32, i32) {
    %c0_i32 = arith.constant 0 : i32
    %c0_i32_0 = arith.constant 0 : i32
    %c0_i32_1 = arith.constant 0 : i32
    return %c0_i32, %c0_i32_0 : i32, i32
  }
  func.func @transform_3(%arg0: i32) -> (i32, i32) {
    %c0_i32 = arith.constant 0 : i32
    %c0_i32_0 = arith.constant 0 : i32
    %c0_i32_1 = arith.constant 0 : i32
    return %c0_i32, %c0_i32_0 : i32, i32
  }
  func.func @transform_4(%arg0: i32) -> (i32, i32) {
    %c0_i32 = arith.constant 0 : i32
    %c0_i32_0 = arith.constant 0 : i32
    %c0_i32_1 = arith.constant 0 : i32
    return %c0_i32, %c0_i32_0 : i32, i32
  }
  func.func @transform_5(%arg0: i32) -> (i32, i32) {
    %c0_i32 = arith.constant 0 : i32
    %c0_i32_0 = arith.constant 0 : i32
    %c0_i32_1 = arith.constant 0 : i32
    return %c0_i32, %c0_i32_0 : i32, i32
  }
  func.func @transform_6(%arg0: i32) -> (i32, i32) {
    %c0_i32 = arith.constant 0 : i32
    %c0_i32_0 = arith.constant 0 : i32
    %c0_i32_1 = arith.constant 0 : i32
    return %c0_i32, %c0_i32_0 : i32, i32
  }
  func.func @transform_7(%arg0: i32) -> (i32, i32) {
    %c0_i32 = arith.constant 0 : i32
    %c0_i32_0 = arith.constant 0 : i32
    %c0_i32_1 = arith.constant 0 : i32
    return %c0_i32, %c0_i32_0 : i32, i32
  }
  func.func @transform_8(%arg0: i32) -> (i32, i32) {
    %c0_i32 = arith.constant 0 : i32
    %c0_i32_0 = arith.constant 0 : i32
    return %arg0, %c0_i32 : i32, i32
  }
}

</mosaic_0001>

<llo_original>
// kernel: critic_forward.1
$region0: #{critic_forward.1}
  #allocation0 [shape = 'u32[]', space=smem, size = 0x4, offset = 0x4, fixed_abs, tag = 'smem constant byte address 0x4 - core index']
  #allocation1 [shape = 'u32[72,128]{1,0:T(1,128)}', space=vmem, size = 0x9000, scoped, tag = 'internal scratch']
  #allocation2 [shape = 'f32[1,1]{1,0:T(1,128)S(1)}', space=vmem, size = 0x200, scoped, tag = 'scoped memory for critic_forward.1']
  %s0 = inlined_call_operand.vmem [shape: f32[8,12], index: 0, kind: input, shape index: {}]
  %s1 = inlined_call_operand.vmem [shape: f32[8,4], index: 1, kind: input, shape index: {}]
  %s2 = inlined_call_operand.hbm [shape: f32[16,32], index: 2, kind: input, shape index: {}]
  %s3 = inlined_call_operand.vmem [shape: f32[1,32], index: 3, kind: input, shape index: {}]
  %s4 = inlined_call_operand.hbm [shape: f32[32,32], index: 4, kind: input, shape index: {}]
  %s5 = inlined_call_operand.vmem [shape: f32[1,32], index: 5, kind: input, shape index: {}]
  %s6 = inlined_call_operand.vmem [shape: f32[1,32], index: 6, kind: input, shape index: {}]
  %s7 = inlined_call_operand.<no memory space> [shape: f32[1,1], index: 7, kind: input, shape index: {}]
  %s8 = inlined_call_operand.vmem [shape: f32[8,1], index: 8, kind: output, shape index: {}]
  %s9 = sld [smem:[#allocation0]]
  $region50: #{critic_forward.1} parent=0
    _
  %s11 = ssub.s32 1, %s9
  %s12 = scalar_select 0, %s11, %s9
  %v13 = vstv %s7
  %14 = vst [vmem:[#allocation2] sm:$0x1] %v13
  $region1: #{critic_forward.1} parent=0
    #allocation3 [shape = 'u8[8192]{0}', space=vmem, size = 0x2000, scoped, tag = 'input window, operand 2, single buffered']
    #allocation4 [shape = 's32[1]{0}', space=sflag, size = 0x4, scoped, tag = 'scoped memory for critic_forward.1']
    #allocation5 [shape = 'u8[16384]{0}', space=vmem, size = 0x4000, scoped, tag = 'input window, operand 4, single buffered']
    #allocation6 [shape = 's32[1]{0}', space=sflag, size = 0x4, scoped, tag = 'scoped memory for critic_forward.1']
    %15 = vsyncpa [#allocation4], 0
    %16 = vsyncpa [#allocation6], 0
    // Predicated region
    $region2: #{critic_forward.1} parent=1 // pred_check
      _
    $region3: #{critic_forward.1} parent=1 // pred_check_branch
      %18 = sbr.rel (0) target = $region5
    $region4: #{critic_forward.1} parent=1 // pred_region
      _
    $region5: #{critic_forward.1} parent=1 // pred_fallthru
      _
    // Predicated region
    $region6: #{critic_forward.1} parent=1 // pred_check
      _
    $region7: #{critic_forward.1} parent=1 // pred_check_branch
      %20 = sbr.rel (0) target = $region9
    $region8: #{critic_forward.1} parent=1 // pred_region
      _
    $region9: #{critic_forward.1} parent=1 // pred_fallthru
      _
    // Predicated region
    $region10: #{critic_forward.1} parent=1 // pred_check
      _
    $region11: #{critic_forward.1} parent=1 // pred_check_branch
      %22 = sbr.rel (0) target = $region13
    $region12: #{critic_forward.1} parent=1 // pred_region
      %24 = vsyncadd [#allocation4], 0
      %s25 = sshll.u32 %s2, 4
      %s26 = int_to_ptr.hbm [resolvable:$true] %s25
      %s27 = sshll.u32 [#allocation3], 4
      %s28 = int_to_ptr.vmem [resolvable:$true] %s27
      %33 = dma.hbm_to_vmem [thread:$0]  %s26, 256, %s28, [#allocation4], 128, 128, 8
    $region13: #{critic_forward.1} parent=1 // pred_fallthru
      _
    // Predicated region
    $region14: #{critic_forward.1} parent=1 // pred_check
      _
    $region15: #{critic_forward.1} parent=1 // pred_check_branch
      %35 = sbr.rel (0) target = $region17
    $region16: #{critic_forward.1} parent=1 // pred_region
      _
    $region17: #{critic_forward.1} parent=1 // pred_fallthru
      _
    // Predicated region
    $region18: #{critic_forward.1} parent=1 // pred_check
      _
    $region19: #{critic_forward.1} parent=1 // pred_check_branch
      %37 = sbr.rel (0) target = $region21
    $region20: #{critic_forward.1} parent=1 // pred_region
      %39 = vsyncadd [#allocation6], 0
      %s40 = sshll.u32 %s4, 4
      %s41 = int_to_ptr.hbm [resolvable:$true] %s40
      %s42 = sshll.u32 [#allocation5], 4
      %s43 = int_to_ptr.vmem [resolvable:$true] %s42
      %48 = dma.hbm_to_vmem [thread:$0]  %s41, 512, %s43, [#allocation6], 128, 128, 8
    $region21: #{critic_forward.1} parent=1 // pred_fallthru
      _
    // Predicated region
    $region22: #{critic_forward.1} parent=1 // pred_check
      _
    $region23: #{critic_forward.1} parent=1 // pred_check_branch
      %50 = sbr.rel (0) target = $region25
    $region24: #{critic_forward.1} parent=1 // pred_region
      _
    $region25: #{critic_forward.1} parent=1 // pred_fallthru
      _
    // Predicated region
    $region26: #{critic_forward.1} parent=1 // pred_check
      _
    $region27: #{critic_forward.1} parent=1 // pred_check_branch
      %52 = sbr.rel (0) target = $region29
    $region28: #{critic_forward.1} parent=1 // pred_region
      _
    $region29: #{critic_forward.1} parent=1 // pred_fallthru
      _
    // Predicated region
    $region30: #{critic_forward.1} parent=1 // pred_check
      _
    $region31: #{critic_forward.1} parent=1 // pred_check_branch
      %54 = sbr.rel (0) target = $region33
    $region32: #{critic_forward.1} parent=1 // pred_region
      _
    $region33: #{critic_forward.1} parent=1 // pred_fallthru
      _
    // Predicated region
    $region34: #{critic_forward.1} parent=1 // pred_check
      _
    $region35: #{critic_forward.1} parent=1 // pred_check_branch
      %56 = sbr.rel (0) target = $region37
    $region36: #{critic_forward.1} parent=1 // pred_region
      %58 = dma.done [#allocation4], 256
    $region37: #{critic_forward.1} parent=1 // pred_fallthru
      _
    // Predicated region
    $region38: #{critic_forward.1} parent=1 // pred_check
      _
    $region39: #{critic_forward.1} parent=1 // pred_check_branch
      %60 = sbr.rel (0) target = $region41
    $region40: #{critic_forward.1} parent=1 // pred_region
      %62 = dma.done [#allocation6], 512
    $region41: #{critic_forward.1} parent=1 // pred_fallthru
      _
    %v63 = vld [vmem:[%s0] sm:$0xff]
    %v64 = vld [vmem:[%s1] sm:$0xff]
    %66 = vrot.lane.b32.xlu0 %v64, 12
    %v67 = vpop.permute.xlu0 %66
    %vm69 = vcmask 97280
    %v70 = vsel %vm69, %v63, %v67
    %v71 = vld [vmem:[#allocation3] sm:$0xff]
    %v72 = vld [vmem:[#allocation3 + $0x8] sm:$0xff]
    %v73 = vld [vmem:[%s3] sm:$0x1]
    %v75 = vperm.slane %v73, 0
    %vm77 = vcmask 130048
    %v79 = vsel %vm77, %v70, 0
    %81 = vmatpush.msra.mxu0 0.0
    %82 = vmatpush.msra.mxu0 0.0
    %83 = vmatpush.msra.mxu0 0.0
    %84 = vmatpush.msra.mxu0 0.0
    %85 = vmatpush.msra.mxu0 0.0
    %86 = vmatpush.msra.mxu0 0.0
    %87 = vmatpush.msra.mxu0 0.0
    %88 = vmatpush.msra.mxu0 0.0
    %89 = vmatpush.msra.mxu0 0.0
    %90 = vmatpush.msra.mxu0 0.0
    %91 = vmatpush.msra.mxu0 0.0
    %92 = vmatpush.msra.mxu0 0.0
    %93 = vmatpush.msra.mxu0 0.0
    %94 = vmatpush.msra.mxu0 0.0
    %95 = vmatpush.msra.mxu0 %v72
    %96 = vmatpush.msra.mxu0 %v71
    %97 = vmatmul.f32.gmra.mxu0 %v79
    %v98 = vpop.f32.mrf.mxu0
    %v99 = vadd.f32 %v75, %v98
    %100 = vdwg.mxu0
    %v101 = vmax.f32 %v99, 0.0
    %v102 = vld [vmem:[#allocation5] sm:$0xff]
    %v103 = vld [vmem:[#allocation5 + $0x8] sm:$0xff]
    %v104 = vld [vmem:[#allocation5 + $0x10] sm:$0xff]
    %v105 = vld [vmem:[#allocation5 + $0x18] sm:$0xff]
    %v106 = vld [vmem:[%s5] sm:$0x1]
    %v108 = vperm.slane %v106, 0
    %vm110 = vcmask 261120
    %v112 = vsel %vm110, %v101, 0
    %114 = vmatpush.msra.mxu0 0.0
    %115 = vmatpush.msra.mxu0 0.0
    %116 = vmatpush.msra.mxu0 0.0
    %117 = vmatpush.msra.mxu0 0.0
    %118 = vmatpush.msra.mxu0 0.0
    %119 = vmatpush.msra.mxu0 0.0
    %120 = vmatpush.msra.mxu0 0.0
    %121 = vmatpush.msra.mxu0 0.0
    %122 = vmatpush.msra.mxu0 0.0
    %123 = vmatpush.msra.mxu0 0.0
    %124 = vmatpush.msra.mxu0 0.0
    %125 = vmatpush.msra.mxu0 0.0
    %126 = vmatpush.msra.mxu0 %v105
    %127 = vmatpush.msra.mxu0 %v104
    %128 = vmatpush.msra.mxu0 %v103
    %129 = vmatpush.msra.mxu0 %v102
    %130 = vmatmul.f32.gmra.mxu0 %v112
    %v131 = vpop.f32.mrf.mxu0
    %v132 = vadd.f32 %v108, %v131
    %133 = vdwg.mxu0
    %v134 = vmax.f32 %v132, 0.0
    %v135 = vld [vmem:[%s6] sm:$0x1]
    %v137 = vperm.slane %v135, 0
    %v139 = vmul.f32 %v134, %v137
    %v140 = vsel %vm110, %v139, 0.0
    %141 = vadd.xlane.f32.xlu0 %v140
    %v142 = vpop.xlane.xlu0 %141
    %v143 = vld [vmem:[#allocation2] sm:$0x1]
    %v145 = vperm.slane %v143, 0
    %v147 = vadd.f32 %v142, %v145
    %vm148 = vcmask 7168
    %149 = vst.msk [vmem:[%s8] sm:$0xff] %vm148, %v147
    // Predicated region
    $region42: #{critic_forward.1} parent=1 // pred_check
      _
    $region43: #{critic_forward.1} parent=1 // pred_check_branch
      %151 = sbr.rel (0) target = $region45
    $region44: #{critic_forward.1} parent=1 // pred_region
      _
    $region45: #{critic_forward.1} parent=1 // pred_fallthru
      _
    // Predicated region
    $region46: #{critic_forward.1} parent=1 // pred_check
      _
    $region47: #{critic_forward.1} parent=1 // pred_check_branch
      %153 = sbr.rel (0) target = $region49
    $region48: #{critic_forward.1} parent=1 // pred_region
      _
    $region49: #{critic_forward.1} parent=1 // pred_fallthru
      _
    %154 = vsyncpa [#allocation4], 1
    %155 = vsyncpa [#allocation6], 1

</llo_original>
